<compile_context>
chip_gen: v7x
topology: tpu7x:2x2x1
jax: 0.10.0
libtpu: 0.0.40
codegen_flags: <defaults>
</compile_context>

<pallas_src>
from functools import partial

import jax
import jax.numpy as jnp
from jax.experimental import pallas as pl
from jax.experimental.pallas import tpu as pltpu


# ----------------------------------------------------------------------------
# Kernel
# ----------------------------------------------------------------------------
def _downblock_kernel(x_ref, w1_ref, b1_ref, w2_ref, b2_ref, o_ref, *,
                      w_in, cin, wp, cmid, cout, matmul_dtype):
    nb, hp, kin = x_ref.shape            # kin = 2 * w_in * cin (row pair packed)
    wc = w_in * cin

    x = x_ref[...].astype(jnp.float32)

    def shl(a, k):
        # Circular lane shift left by k lanes: result[..., j] = a[..., (j + k) % L].
        # Implemented as two dense lane slices + one concat (XLU work only).
        return jnp.concatenate([a[..., k:], a[..., :k]], axis=-1)

    # ---- MaxPool2d(2), fully lane-dense -----------------------------------
    # Lane packing of x is (row-in-pair, W, Cin).
    #   H pool: max with the copy shifted left by W*Cin lanes.
    #   W pool: max with the copy shifted left by Cin lanes.
    # The result is "dilated": the pooled value for (pooled col xp, chan i)
    # sits at lane 2*xp*Cin + i; every other lane is garbage that the banded
    # conv1 weights multiply by exact zeros.
    hmax = jnp.maximum(x, shl(x, wc))
    pooled = jnp.maximum(hmax, shl(hmax, cin))            # (nb, hp, kin)

    def row_taps(a):
        # 3 vertically shifted copies (dy = -1, 0, +1), zero rows at the image
        # boundary.  Shifts are sublane-axis concats of full-lane-width data.
        nb_, hp_, L = a.shape
        z = jnp.zeros((nb_, 1, L), jnp.float32)
        up = jnp.concatenate([z, a[:, :hp_ - 1, :]], axis=1)   # row y-1
        dn = jnp.concatenate([a[:, 1:, :], z], axis=1)          # row y+1
        m = nb_ * hp_
        return (up.reshape(m, L), a.reshape(m, L), dn.reshape(m, L))

    def banded_conv_relu(a, wband_ref, bias_ref):
        # a: (nb, hp, K) lane-packed activation; wband_ref: (3, K, N) banded
        # weights (one per kernel row); bias_ref: (1, N) lane-packed bias.
        taps = row_taps(a)
        y = None
        for dy in range(3):
            lhs = taps[dy].astype(matmul_dtype)
            rhs = wband_ref[dy].astype(matmul_dtype)
            d = jnp.dot(lhs, rhs, preferred_element_type=jnp.float32)
            y = d if y is None else y + d
        return jnp.maximum(y + bias_ref[...].astype(jnp.float32), 0.0)

    h1 = banded_conv_relu(pooled, w1_ref, b1_ref)          # (nb*hp, wp*cmid)
    h2 = banded_conv_relu(h1.reshape(nb, hp, wp * cmid),   # (nb*hp, wp*cout)
                          w2_ref, b2_ref)

    # TODO(synk): Dropout2d (drop_=True) path not implemented; module default drop_=False.
    # Lane-dense store: last dim = wp*cout (128 for the test shapes).
    o_ref[...] = h2.reshape(nb, hp, wp * cout).astype(o_ref.dtype)


# ----------------------------------------------------------------------------
# Wrapper-side weight preparation (tiny, runs once outside the kernel)
# ----------------------------------------------------------------------------
def _band_weights(w_oihw, wp, k_stride, k_total):
    """Banded conv weights for the lane-packed formulation.

    The conv input is lane-packed with (column xi, channel i) at K-row index
    xi * k_stride + i; k_total is the full K extent (rows past wp*k_stride are
    zero).  Returns (3, k_total, wp*Cout) with
      W[dy, xi*k_stride + i, xo*Cout + o] = w[o, i, dy, xi - xo + 1]  if |xi-xo| <= 1
                                            0                         otherwise
    so the W-dimension shifts and zero padding are absorbed into the weights.
    """
    cout, cin, _, _ = w_oihw.shape
    w = jnp.transpose(w_oihw, (2, 3, 1, 0)).astype(jnp.float32)   # (dy, dx, cin, cout)
    xi = jnp.arange(wp)[:, None]
    xo = jnp.arange(wp)[None, :]
    dx = xi - xo + 1                                              # (wp, wp)
    valid = ((dx >= 0) & (dx <= 2)).astype(w.dtype)
    blk = w[:, jnp.clip(dx, 0, 2)]                                # (3, wp, wp, cin, cout)
    blk = blk * valid[None, :, :, None, None]
    blk = jnp.transpose(blk, (0, 1, 3, 2, 4))                     # (dy, xi, cin, xo, cout)
    blk = blk.reshape(3, wp, cin, wp * cout)

    big = jnp.zeros((3, wp, k_stride, wp * cout), w.dtype)
    big = big.at[:, :, :cin, :].set(blk)                          # rows xi*k_stride + i
    big = big.reshape(3, wp * k_stride, wp * cout)
    if wp * k_stride < k_total:
        big = jnp.pad(big, ((0, 0), (0, k_total - wp * k_stride), (0, 0)))
    return big


def _pick_nb(N, hp, kin, n1, n2, budget_bytes=32 << 20):
    """Images per grid step, sized against a ~32 MiB VMEM working-set budget
    (safe for v7x's 64 MiB VMEM; vmem_limit_bytes below is raised to 48 MiB)."""
    # Rough per-image f32 working set: input + pooled/shift copies + conv
    # outputs; conservative multipliers.
    per_img = 4 * hp * (6 * kin + 5 * n1 + 2 * n2) + 4096
    nb = int(max(1, min(N, budget_bytes // (2 * per_img))))
    if nb >= N and N >= 2:
        nb = max(1, N // 2)     # keep >= 2 grid steps so v7x can use both TCs
    while N % nb:
        nb -= 1
    return nb


# ----------------------------------------------------------------------------
# Forward passes
# ----------------------------------------------------------------------------
def downblock_forward_nhwc(x_nhwc, w1, b1, w2, b2, *, nb=None,
                           matmul_dtype=jnp.float32):
    """Fast path: NHWC in, NHWC out — only free reshapes outside the kernel.

    x_nhwc: (N, H, W, Cin); w1/w2: PyTorch OIHW conv weights; b1/b2: biases.
    Returns (N, H//2, W//2, Cout).
    """
    N, H, W, Cin = x_nhwc.shape
    Cmid, Cout = w1.shape[0], w2.shape[0]
    # TODO(synk): PyTorch MaxPool2d(2) floors odd H/W; this kernel requires even H, W.
    assert H % 2 == 0 and W % 2 == 0, "kernel requires even H, W"
    Hp, Wp = H // 2, W // 2
    kin = 2 * W * Cin            # packed input lane width (128 for test shapes)
    n1 = Wp * Cmid               # packed conv1 output lane width
    n2 = Wp * Cout               # packed conv2 output lane width (128 for test)
    # Note: for non-test shapes, pad Cout so that n2 % 128 == 0 to keep the
    # output store unmasked (lane-dense out_spec is the biggest single lever).

    if nb is None:
        nb = _pick_nb(N, Hp, kin, n1, n2)
    assert N % nb == 0, (N, nb)
    grid_n = N // nb

    # Row-pair packing is a pure reshape of the contiguous NHWC tensor
    # (no HBM transpose before or after the kernel).
    x_packed = x_nhwc.reshape(N, Hp, kin)

    w1b = _band_weights(w1, Wp, 2 * Cin, kin)    # (3, kin, n1), dilated K rows
    w2b = _band_weights(w2, Wp, Cmid, n1)        # (3, n1, n2)
    b1p = jnp.tile(b1.astype(jnp.float32), Wp).reshape(1, n1)
    b2p = jnp.tile(b2.astype(jnp.float32), Wp).reshape(1, n2)

    kernel = partial(_downblock_kernel, w_in=W, cin=Cin, wp=Wp,
                     cmid=Cmid, cout=Cout, matmul_dtype=matmul_dtype)

    out_packed = pl.pallas_call(
        kernel,
        out_shape=jax.ShapeDtypeStruct((N, Hp, n2), x_nhwc.dtype),
        grid_spec=pltpu.PrefetchScalarGridSpec(
            num_scalar_prefetch=0,
            grid=(grid_n,),
            in_specs=[
                pl.BlockSpec((nb, Hp, kin), lambda n: (n, 0, 0)),
                pl.BlockSpec((3, kin, n1), lambda n: (0, 0, 0)),
                pl.BlockSpec((1, n1), lambda n: (0, 0)),
                pl.BlockSpec((3, n1, n2), lambda n: (0, 0, 0)),
                pl.BlockSpec((1, n2), lambda n: (0, 0)),
            ],
            out_specs=pl.BlockSpec((nb, Hp, n2), lambda n: (n, 0, 0)),
        ),
        compiler_params=pltpu.CompilerParams(
            dimension_semantics=("parallel",),
            vmem_limit_bytes=48 * 1024 * 1024),
    )(x_packed, w1b, b1p, w2b, b2p)

    return out_packed.reshape(N, Hp, Wp, Cout)


def downblock_forward(x_nchw, w1, b1, w2, b2, **kw):
    """PyTorch-layout convenience wrapper: NCHW in, NCHW out.

    The two transposes here are full-tensor HBM copies; prefer
    `downblock_forward_nhwc` when the producer/consumer can use NHWC.
    """
    x_nhwc = jnp.transpose(x_nchw, (0, 2, 3, 1))
    out = downblock_forward_nhwc(x_nhwc, w1, b1, w2, b2, **kw)
    return jnp.transpose(out, (0, 3, 1, 2))


# ----------------------------------------------------------------------------
# Pure-JAX reference (mirrors the PyTorch forward, NCHW)
# ----------------------------------------------------------------------------
def ref_downblock(x, w1, b1, w2, b2):
    pooled = jax.lax.reduce_window(x, -jnp.inf, jax.lax.max,
                                   (1, 1, 2, 2), (1, 1, 2, 2), 'VALID')
    y = jax.lax.conv_general_dilated(pooled, w1, (1, 1), ((1, 1), (1, 1)),
                                     dimension_numbers=('NCHW', 'OIHW', 'NCHW'),
                                     precision=jax.lax.Precision.HIGHEST)
    y = jnp.maximum(y + b1[None, :, None, None], 0.0)
    y = jax.lax.conv_general_dilated(y, w2, (1, 1), ((1, 1), (1, 1)),
                                     dimension_numbers=('NCHW', 'OIHW', 'NCHW'),
                                     precision=jax.lax.Precision.HIGHEST)
    y = jnp.maximum(y + b2[None, :, None, None], 0.0)
    return y


if __name__ == "__main__":
    # Small shapes: batch=2, in_channels=4, block_channels=8, out_channels=16, H=W=16
    N, Cin, H, W = 2, 4, 16, 16
    Cmid, Cout = 8, 16

    key = jax.random.PRNGKey(0)
    kx, kw1, kb1, kw2, kb2 = jax.random.split(key, 5)
    x = jax.random.normal(kx, (N, Cin, H, W), jnp.float32)
    w1 = 0.1 * jax.random.normal(kw1, (Cmid, Cin, 3, 3), jnp.float32)   # conv1.weight (OIHW)
    b1 = 0.1 * jax.random.normal(kb1, (Cmid,), jnp.float32)             # conv1.bias
    w2 = 0.1 * jax.random.normal(kw2, (Cout, Cmid, 3, 3), jnp.float32)  # conv2.weight (OIHW)
    b2 = 0.1 * jax.random.normal(kb2, (Cout,), jnp.float32)             # conv2.bias

    out = downblock_forward(x, w1, b1, w2, b2)
    out = jax.block_until_ready(out)

    ref = ref_downblock(x, w1, b1, w2, b2)
    assert out.shape == (N, Cout, H // 2, W // 2), out.shape
    assert jnp.allclose(out, ref, atol=1e-3, rtol=1e-3), \
        f"max abs err {jnp.max(jnp.abs(out - ref))}"

    print("KERNEL_OK")
</pallas_src>

<mosaic_0001>
module attributes {stable_mosaic.version = 11 : i64} {
  func.func @_downblock_kernel(%arg0: i32, %arg1: memref<1x8x128xf32, #tpu.memory_space<vmem>>, %arg2: memref<3x128x64xf32, #tpu.memory_space<vmem>>, %arg3: memref<1x64xf32, #tpu.memory_space<vmem>>, %arg4: memref<3x64x128xf32, #tpu.memory_space<vmem>>, %arg5: memref<1x128xf32, #tpu.memory_space<vmem>>, %arg6: memref<1x8x128xf32, #tpu.memory_space<vmem>>) attributes {dimension_semantics = [#tpu.dimension_semantics<parallel>], iteration_bounds = array<i64: 2>, scalar_prefetch = 0 : i64, scratch_operands = 0 : i64, tpu.core_type = #tpu.core_type<tc>, window_params = [{transform_indices = @transform_0, window_bounds = array<i64: 1, 8, 128>}, {pipeline_mode = #tpu.pipeline_mode<synchronous>, transform_indices = @transform_1, window_bounds = array<i64: 3, 128, 64>}, {pipeline_mode = #tpu.pipeline_mode<synchronous>, transform_indices = @transform_2, window_bounds = array<i64: 1, 64>}, {pipeline_mode = #tpu.pipeline_mode<synchronous>, transform_indices = @transform_3, window_bounds = array<i64: 3, 64, 128>}, {pipeline_mode = #tpu.pipeline_mode<synchronous>, transform_indices = @transform_4, window_bounds = array<i64: 1, 128>}, {transform_indices = @transform_5, window_bounds = array<i64: 1, 8, 128>}]} {
    %c0 = arith.constant 0 : index
    %c0_0 = arith.constant 0 : index
    %c0_1 = arith.constant 0 : index
    %0 = vector.load %arg1[%c0, %c0_0, %c0_1] : memref<1x8x128xf32, #tpu.memory_space<vmem>>, vector<1x8x128xf32>
    %1 = vector.extract_strided_slice %0 {offsets = [0, 0, 64], sizes = [1, 8, 64], strides = [1, 1, 1]} : vector<1x8x128xf32> to vector<1x8x64xf32>
    %2 = vector.extract_strided_slice %0 {offsets = [0, 0, 0], sizes = [1, 8, 64], strides = [1, 1, 1]} : vector<1x8x128xf32> to vector<1x8x64xf32>
    %3 = tpu.concatenate %1, %2 in 2 : vector<1x8x64xf32>, vector<1x8x64xf32> -> vector<1x8x128xf32>
    %4 = arith.maximumf %0, %3 : vector<1x8x128xf32>
    %5 = vector.extract_strided_slice %4 {offsets = [0, 0, 4], sizes = [1, 8, 124], strides = [1, 1, 1]} : vector<1x8x128xf32> to vector<1x8x124xf32>
    %6 = vector.extract_strided_slice %4 {offsets = [0, 0, 0], sizes = [1, 8, 4], strides = [1, 1, 1]} : vector<1x8x128xf32> to vector<1x8x4xf32>
    %7 = tpu.concatenate %5, %6 in 2 : vector<1x8x124xf32>, vector<1x8x4xf32> -> vector<1x8x128xf32>
    %8 = arith.maximumf %4, %7 : vector<1x8x128xf32>
    %cst = arith.constant 0.000000e+00 : f32
    %9 = vector.broadcast %cst : f32 to vector<1x1x128xf32>
    %10 = vector.extract_strided_slice %8 {offsets = [0, 0, 0], sizes = [1, 7, 128], strides = [1, 1, 1]} : vector<1x8x128xf32> to vector<1x7x128xf32>
    %11 = tpu.concatenate %9, %10 in 1 : vector<1x1x128xf32>, vector<1x7x128xf32> -> vector<1x8x128xf32>
    %12 = vector.extract_strided_slice %8 {offsets = [0, 1, 0], sizes = [1, 7, 128], strides = [1, 1, 1]} : vector<1x8x128xf32> to vector<1x7x128xf32>
    %13 = tpu.concatenate %12, %9 in 1 : vector<1x7x128xf32>, vector<1x1x128xf32> -> vector<1x8x128xf32>
    %14 = vector.shape_cast %11 : vector<1x8x128xf32> to vector<8x128xf32>
    %15 = vector.shape_cast %8 : vector<1x8x128xf32> to vector<8x128xf32>
    %16 = vector.shape_cast %13 : vector<1x8x128xf32> to vector<8x128xf32>
    %c0_2 = arith.constant 0 : index
    %c0_3 = arith.constant 0 : index
    %c0_4 = arith.constant 0 : index
    %17 = vector.load %arg2[%c0_2, %c0_3, %c0_4] : memref<3x128x64xf32, #tpu.memory_space<vmem>>, vector<1x128x64xf32>
    %18 = vector.shape_cast %17 : vector<1x128x64xf32> to vector<128x64xf32>
    %cst_5 = arith.constant dense<0.000000e+00> : vector<8x64xf32>
    %19 = tpu.matmul %14, %18, %cst_5 {dimension_numbers = #tpu.dot_dimension_numbers<[1], [0], [0], [1], [0, 0, 1, 1], [], []>} : vector<8x128xf32>, vector<128x64xf32>, vector<8x64xf32> -> vector<8x64xf32>
    %c1 = arith.constant 1 : index
    %c0_6 = arith.constant 0 : index
    %c0_7 = arith.constant 0 : index
    %20 = vector.load %arg2[%c1, %c0_6, %c0_7] : memref<3x128x64xf32, #tpu.memory_space<vmem>>, vector<1x128x64xf32>
    %21 = vector.shape_cast %20 : vector<1x128x64xf32> to vector<128x64xf32>
    %cst_8 = arith.constant dense<0.000000e+00> : vector<8x64xf32>
    %22 = tpu.matmul %15, %21, %cst_8 {dimension_numbers = #tpu.dot_dimension_numbers<[1], [0], [0], [1], [0, 0, 1, 1], [], []>} : vector<8x128xf32>, vector<128x64xf32>, vector<8x64xf32> -> vector<8x64xf32>
    %23 = arith.addf %19, %22 : vector<8x64xf32>
    %c2 = arith.constant 2 : index
    %c0_9 = arith.constant 0 : index
    %c0_10 = arith.constant 0 : index
    %24 = vector.load %arg2[%c2, %c0_9, %c0_10] : memref<3x128x64xf32, #tpu.memory_space<vmem>>, vector<1x128x64xf32>
    %25 = vector.shape_cast %24 : vector<1x128x64xf32> to vector<128x64xf32>
    %cst_11 = arith.constant dense<0.000000e+00> : vector<8x64xf32>
    %26 = tpu.matmul %16, %25, %cst_11 {dimension_numbers = #tpu.dot_dimension_numbers<[1], [0], [0], [1], [0, 0, 1, 1], [], []>} : vector<8x128xf32>, vector<128x64xf32>, vector<8x64xf32> -> vector<8x64xf32>
    %27 = arith.addf %23, %26 : vector<8x64xf32>
    %c0_12 = arith.constant 0 : index
    %c0_13 = arith.constant 0 : index
    %28 = vector.load %arg3[%c0_12, %c0_13] : memref<1x64xf32, #tpu.memory_space<vmem>>, vector<1x64xf32>
    %29 = vector.broadcast %28 : vector<1x64xf32> to vector<8x64xf32>
    %30 = arith.addf %27, %29 : vector<8x64xf32>
    %cst_14 = arith.constant 0.000000e+00 : f32
    %31 = vector.broadcast %cst_14 : f32 to vector<8x64xf32>
    %32 = arith.maximumf %30, %31 : vector<8x64xf32>
    %33 = vector.shape_cast %32 : vector<8x64xf32> to vector<1x8x64xf32>
    %cst_15 = arith.constant 0.000000e+00 : f32
    %34 = vector.broadcast %cst_15 : f32 to vector<1x1x64xf32>
    %35 = vector.extract_strided_slice %33 {offsets = [0, 0, 0], sizes = [1, 7, 64], strides = [1, 1, 1]} : vector<1x8x64xf32> to vector<1x7x64xf32>
    %36 = tpu.concatenate %34, %35 in 1 : vector<1x1x64xf32>, vector<1x7x64xf32> -> vector<1x8x64xf32>
    %37 = vector.extract_strided_slice %33 {offsets = [0, 1, 0], sizes = [1, 7, 64], strides = [1, 1, 1]} : vector<1x8x64xf32> to vector<1x7x64xf32>
    %38 = tpu.concatenate %37, %34 in 1 : vector<1x7x64xf32>, vector<1x1x64xf32> -> vector<1x8x64xf32>
    %39 = vector.shape_cast %36 : vector<1x8x64xf32> to vector<8x64xf32>
    %40 = vector.shape_cast %33 : vector<1x8x64xf32> to vector<8x64xf32>
    %41 = vector.shape_cast %38 : vector<1x8x64xf32> to vector<8x64xf32>
    %c0_16 = arith.constant 0 : index
    %c0_17 = arith.constant 0 : index
    %c0_18 = arith.constant 0 : index
    %42 = vector.load %arg4[%c0_16, %c0_17, %c0_18] : memref<3x64x128xf32, #tpu.memory_space<vmem>>, vector<1x64x128xf32>
    %43 = vector.shape_cast %42 : vector<1x64x128xf32> to vector<64x128xf32>
    %cst_19 = arith.constant dense<0.000000e+00> : vector<8x128xf32>
    %44 = tpu.matmul %39, %43, %cst_19 {dimension_numbers = #tpu.dot_dimension_numbers<[1], [0], [0], [1], [0, 0, 1, 1], [], []>} : vector<8x64xf32>, vector<64x128xf32>, vector<8x128xf32> -> vector<8x128xf32>
    %c1_20 = arith.constant 1 : index
    %c0_21 = arith.constant 0 : index
    %c0_22 = arith.constant 0 : index
    %45 = vector.load %arg4[%c1_20, %c0_21, %c0_22] : memref<3x64x128xf32, #tpu.memory_space<vmem>>, vector<1x64x128xf32>
    %46 = vector.shape_cast %45 : vector<1x64x128xf32> to vector<64x128xf32>
    %cst_23 = arith.constant dense<0.000000e+00> : vector<8x128xf32>
    %47 = tpu.matmul %40, %46, %cst_23 {dimension_numbers = #tpu.dot_dimension_numbers<[1], [0], [0], [1], [0, 0, 1, 1], [], []>} : vector<8x64xf32>, vector<64x128xf32>, vector<8x128xf32> -> vector<8x128xf32>
    %48 = arith.addf %44, %47 : vector<8x128xf32>
    %c2_24 = arith.constant 2 : index
    %c0_25 = arith.constant 0 : index
    %c0_26 = arith.constant 0 : index
    %49 = vector.load %arg4[%c2_24, %c0_25, %c0_26] : memref<3x64x128xf32, #tpu.memory_space<vmem>>, vector<1x64x128xf32>
    %50 = vector.shape_cast %49 : vector<1x64x128xf32> to vector<64x128xf32>
    %cst_27 = arith.constant dense<0.000000e+00> : vector<8x128xf32>
    %51 = tpu.matmul %41, %50, %cst_27 {dimension_numbers = #tpu.dot_dimension_numbers<[1], [0], [0], [1], [0, 0, 1, 1], [], []>} : vector<8x64xf32>, vector<64x128xf32>, vector<8x128xf32> -> vector<8x128xf32>
    %52 = arith.addf %48, %51 : vector<8x128xf32>
    %c0_28 = arith.constant 0 : index
    %c0_29 = arith.constant 0 : index
    %53 = vector.load %arg5[%c0_28, %c0_29] : memref<1x128xf32, #tpu.memory_space<vmem>>, vector<1x128xf32>
    %54 = vector.broadcast %53 : vector<1x128xf32> to vector<8x128xf32>
    %55 = arith.addf %52, %54 : vector<8x128xf32>
    %cst_30 = arith.constant 0.000000e+00 : f32
    %56 = vector.broadcast %cst_30 : f32 to vector<8x128xf32>
    %57 = arith.maximumf %55, %56 : vector<8x128xf32>
    %58 = vector.shape_cast %57 : vector<8x128xf32> to vector<1x8x128xf32>
    %c0_31 = arith.constant 0 : index
    %c0_32 = arith.constant 0 : index
    %c0_33 = arith.constant 0 : index
    %59 = vector.load %arg6[%c0_31, %c0_32, %c0_33] : memref<1x8x128xf32, #tpu.memory_space<vmem>>, vector<1x8x128xf32>
    tpu.vector_store %arg6[%c0_31, %c0_32, %c0_33], %58 {strides = array<i32>} : memref<1x8x128xf32, #tpu.memory_space<vmem>>, vector<1x8x128xf32>,
    return
  }
  func.func @transform_0(%arg0: i32) -> (i32, i32, i32) {
    %c0_i32 = arith.constant 0 : i32
    %c0_i32_0 = arith.constant 0 : i32
    %c0_i32_1 = arith.constant 0 : i32
    return %arg0, %c0_i32, %c0_i32_0 : i32, i32, i32
  }
  func.func @transform_1(%arg0: i32) -> (i32, i32, i32) {
    %c0_i32 = arith.constant 0 : i32
    %c0_i32_0 = arith.constant 0 : i32
    %c0_i32_1 = arith.constant 0 : i32
    %c0_i32_2 = arith.constant 0 : i32
    return %c0_i32, %c0_i32_0, %c0_i32_1 : i32, i32, i32
  }
  func.func @transform_2(%arg0: i32) -> (i32, i32) {
    %c0_i32 = arith.constant 0 : i32
    %c0_i32_0 = arith.constant 0 : i32
    %c0_i32_1 = arith.constant 0 : i32
    return %c0_i32, %c0_i32_0 : i32, i32
  }
  func.func @transform_3(%arg0: i32) -> (i32, i32, i32) {
    %c0_i32 = arith.constant 0 : i32
    %c0_i32_0 = arith.constant 0 : i32
    %c0_i32_1 = arith.constant 0 : i32
    %c0_i32_2 = arith.constant 0 : i32
    return %c0_i32, %c0_i32_0, %c0_i32_1 : i32, i32, i32
  }
  func.func @transform_4(%arg0: i32) -> (i32, i32) {
    %c0_i32 = arith.constant 0 : i32
    %c0_i32_0 = arith.constant 0 : i32
    %c0_i32_1 = arith.constant 0 : i32
    return %c0_i32, %c0_i32_0 : i32, i32
  }
  func.func @transform_5(%arg0: i32) -> (i32, i32, i32) {
    %c0_i32 = arith.constant 0 : i32
    %c0_i32_0 = arith.constant 0 : i32
    %c0_i32_1 = arith.constant 0 : i32
    return %arg0, %c0_i32, %c0_i32_0 : i32, i32, i32
  }
}

</mosaic_0001>

<llo_original>
// kernel: tpu_custom_call.1
$region0: #{tpu_custom_call.1}
  #allocation0 [shape = 'u32[]', space=smem, size = 0x4, offset = 0x4, fixed_abs, tag = 'smem constant byte address 0x4 - core index']
  #allocation1 [shape = 'u32[144,128]{1,0:T(1,128)}', space=vmem, size = 0x12000, scoped, tag = 'internal scratch']
  %s0 = inlined_call_operand.vmem [shape: f32[2,8,128], index: 0, kind: input, shape index: {}]
  %s1 = inlined_call_operand.vmem [shape: f32[3,128,64], index: 1, kind: input, shape index: {}]
  %s2 = inlined_call_operand.vmem [shape: f32[1,64], index: 2, kind: input, shape index: {}]
  %s3 = inlined_call_operand.vmem [shape: f32[3,64,128], index: 3, kind: input, shape index: {}]
  %s4 = inlined_call_operand.vmem [shape: f32[1,128], index: 4, kind: input, shape index: {}]
  %s5 = inlined_call_operand.hbm [shape: f32[2,8,128], index: 5, kind: output, shape index: {}]
  %s6 = sld [smem:[#allocation0]]
  $region53: #{tpu_custom_call.1} parent=0
    _
  %s8 = ssub.s32 1, %s6
  %s9 = scalar_select 0, %s8, %s6
  $region1: #{tpu_custom_call.1} parent=0
    #allocation2 [shape = 'u8[8192]{0}', space=vmem, size = 0x2000, scoped, tag = 'output window, operand 0']
    #allocation3 [shape = 's32[2]{0}', space=sflag, size = 0x8, scoped, tag = 'scoped memory for tpu_custom_call.1']
    %10 = vsyncpa [#allocation3], 0
    %s11 = scalar_lea.sflag [#allocation3], 1
    %12 = vsyncpa %s11, 0
    loop: start=0, step=1, limit=4
    $region2: #{tpu_custom_call.1} parent=1 // loop_pre_header
      _
    $region3: #{tpu_custom_call.1} parent=1 // loop_header
      %s14 = sphi 0, %s18
      %p15 = scmp.ge.s32.totalorder %s14, 4
      %s24 = sphi 0, %s26
      %s27 = sphi 0, %s24
      %s28 = sphi 0, %s27
      %s44 = sphi 0, %s28
      %s48 = sphi 0, %s48
      %s50 = sphi 0, %s48
      %s51 = sphi 0, %s50
      %s65 = sphi 0, %s51
      %s69 = sphi 0, %s69
      %s71 = sphi 0, %s69
      %s72 = sphi 0, %s71
      %s86 = sphi 0, %s72
      %s90 = sphi 0, %s90
      %s92 = sphi 0, %s90
      %s93 = sphi 0, %s92
      %s107 = sphi 0, %s93
      %s111 = sphi 0, %s111
      %s113 = sphi 0, %s111
      %s114 = sphi 0, %s113
      %s128 = sphi 0, %s114
      %s134 = sphi 0, %s136
      %s137 = sphi 0, %s134
      %s138 = sphi 0, %s137
      %s154 = sphi 0, %s138
    $region4: #{tpu_custom_call.1} parent=1 // loop_header_branch
      %17 = sbr.rel (%p15) target = $region8
    $region5: #{tpu_custom_call.1} parent=1 // loop_body
      %s19 = ssub.s32 %s14, 1
      %s20 = ssub.s32 %s14, 2
      %s21 = sadd.s32 %s14, 1
      %s22 = ssub.s32 %s14, %s21
      %p23 = scmp.eq.s32.totalorder %s22, 0
      %s25 = sadd.s32 %s24, 1
      %s26 = scalar_select %p23, %s24, %s25
      %p29 = pneg %p23
      %p30 = scmp.eq.s32.totalorder %s14, 1
      %p31 = por %p29, %p30
      %p32 = scmp.ne.s32.totalorder %s24, %s27
      %p33 = scmp.eq.s32.totalorder %s14, 0
      %p34 = por %p32, %p33
      %p35 = scmp.ne.s32.totalorder %s24, %s27
      %p36 = scmp.eq.s32.totalorder %s19, 1
      %p37 = por %p35, %p36
      %p38 = scmp.ne.s32.totalorder %s27, %s28
      %p39 = scmp.eq.s32.totalorder %s19, 0
      %p40 = por %p38, %p39
      %p41 = scmp.ne.s32.totalorder %s27, %s28
      %p42 = scmp.eq.s32.totalorder %s20, 1
      %p43 = por %p41, %p42
      %p45 = scmp.ne.s32.totalorder %s28, %s44
      %p46 = scmp.eq.s32.totalorder %s20, 0
      %p47 = por %p45, %p46
      %s49 = sadd.s32 %s48, 1
      %p52 = scmp.eq.s32.totalorder %s14, 1
      %p53 = scmp.ne.s32.totalorder %s48, %s50
      %p54 = scmp.eq.s32.totalorder %s14, 0
      %p55 = por %p53, %p54
      %p56 = scmp.ne.s32.totalorder %s48, %s50
      %p57 = scmp.eq.s32.totalorder %s19, 1
      %p58 = por %p56, %p57
      %p59 = scmp.ne.s32.totalorder %s50, %s51
      %p60 = scmp.eq.s32.totalorder %s19, 0
      %p61 = por %p59, %p60
      %p62 = scmp.ne.s32.totalorder %s50, %s51
      %p63 = scmp.eq.s32.totalorder %s20, 1
      %p64 = por %p62, %p63
      %p66 = scmp.ne.s32.totalorder %s51, %s65
      %p67 = scmp.eq.s32.totalorder %s20, 0
      %p68 = por %p66, %p67
      %s70 = sadd.s32 %s69, 1
      %p73 = scmp.eq.s32.totalorder %s14, 1
      %p74 = scmp.ne.s32.totalorder %s69, %s71
      %p75 = scmp.eq.s32.totalorder %s14, 0
      %p76 = por %p74, %p75
      %p77 = scmp.ne.s32.totalorder %s69, %s71
      %p78 = scmp.eq.s32.totalorder %s19, 1
      %p79 = por %p77, %p78
      %p80 = scmp.ne.s32.totalorder %s71, %s72
      %p81 = scmp.eq.s32.totalorder %s19, 0
      %p82 = por %p80, %p81
      %p83 = scmp.ne.s32.totalorder %s71, %s72
      %p84 = scmp.eq.s32.totalorder %s20, 1
      %p85 = por %p83, %p84
      %p87 = scmp.ne.s32.totalorder %s72, %s86
      %p88 = scmp.eq.s32.totalorder %s20, 0
      %p89 = por %p87, %p88
      %s91 = sadd.s32 %s90, 1
      %p94 = scmp.eq.s32.totalorder %s14, 1
      %p95 = scmp.ne.s32.totalorder %s90, %s92
      %p96 = scmp.eq.s32.totalorder %s14, 0
      %p97 = por %p95, %p96
      %p98 = scmp.ne.s32.totalorder %s90, %s92
      %p99 = scmp.eq.s32.totalorder %s19, 1
      %p100 = por %p98, %p99
      %p101 = scmp.ne.s32.totalorder %s92, %s93
      %p102 = scmp.eq.s32.totalorder %s19, 0
      %p103 = por %p101, %p102
      %p104 = scmp.ne.s32.totalorder %s92, %s93
      %p105 = scmp.eq.s32.totalorder %s20, 1
      %p106 = por %p104, %p105
      %p108 = scmp.ne.s32.totalorder %s93, %s107
      %p109 = scmp.eq.s32.totalorder %s20, 0
      %p110 = por %p108, %p109
      %s112 = sadd.s32 %s111, 1
      %p115 = scmp.eq.s32.totalorder %s14, 1
      %p116 = scmp.ne.s32.totalorder %s111, %s113
      %p117 = scmp.eq.s32.totalorder %s14, 0
      %p118 = por %p116, %p117
      %p119 = scmp.ne.s32.totalorder %s111, %s113
      %p120 = scmp.eq.s32.totalorder %s19, 1
      %p121 = por %p119, %p120
      %p122 = scmp.ne.s32.totalorder %s113, %s114
      %p123 = scmp.eq.s32.totalorder %s19, 0
      %p124 = por %p122, %p123
      %p125 = scmp.ne.s32.totalorder %s113, %s114
      %p126 = scmp.eq.s32.totalorder %s20, 1
      %p127 = por %p125, %p126
      %p129 = scmp.ne.s32.totalorder %s114, %s128
      %p130 = scmp.eq.s32.totalorder %s20, 0
      %p131 = por %p129, %p130
      %s132 = ssub.s32 %s14, %s21
      %p133 = scmp.eq.s32.totalorder %s132, 0
      %s135 = sadd.s32 %s134, 1
      %s136 = scalar_select %p133, %s134, %s135
      %p139 = pneg %p133
      %p140 = scmp.eq.s32.totalorder %s14, 1
      %p141 = por %p139, %p140
      %p142 = scmp.ne.s32.totalorder %s134, %s137
      %p143 = scmp.eq.s32.totalorder %s14, 0
      %p144 = por %p142, %p143
      %p145 = scmp.ne.s32.totalorder %s134, %s137
      %p146 = scmp.eq.s32.totalorder %s19, 1
      %p147 = por %p145, %p146
      %p148 = scmp.ne.s32.totalorder %s137, %s138
      %p149 = scmp.eq.s32.totalorder %s19, 0
      %p150 = por %p148, %p149
      %p151 = scmp.ne.s32.totalorder %s137, %s138
      %p152 = scmp.eq.s32.totalorder %s20, 1
      %p153 = por %p151, %p152
      %p155 = scmp.ne.s32.totalorder %s138, %s154
      %p156 = scmp.eq.s32.totalorder %s20, 0
      %p157 = por %p155, %p156
      %p158 = scmp.le.s32.totalorder 1, %s14
      %p159 = scmp.lt.s32.totalorder %s14, 3
      %p160 = pnand %p158, %p159
      %p161 = pneg %p160
      // Predicated region
      $region9: #{tpu_custom_call.1} parent=5 // pred_check
        _
      $region10: #{tpu_custom_call.1} parent=5 // pred_check_branch
        %163 = sbr.rel (%p160) target = $region12
      $region11: #{tpu_custom_call.1} parent=5 // pred_region
        %s164 = ssub.s32 %s14, 1
        // Predicated region
        $region13: #{tpu_custom_call.1} parent=11 // pred_check
          %p165 = pneg %p61
        $region14: #{tpu_custom_call.1} parent=11 // pred_check_branch
          %167 = sbr.rel (%p165) target = $region16
        $region15: #{tpu_custom_call.1} parent=11 // pred_region
          _
        $region16: #{tpu_custom_call.1} parent=11 // pred_fallthru
          _
        // Predicated region
        $region17: #{tpu_custom_call.1} parent=11 // pred_check
          %p168 = pneg %p82
        $region18: #{tpu_custom_call.1} parent=11 // pred_check_branch
          %170 = sbr.rel (%p168) target = $region20
        $region19: #{tpu_custom_call.1} parent=11 // pred_region
          _
        $region20: #{tpu_custom_call.1} parent=11 // pred_fallthru
          _
        // Predicated region
        $region21: #{tpu_custom_call.1} parent=11 // pred_check
          %p171 = pneg %p103
        $region22: #{tpu_custom_call.1} parent=11 // pred_check_branch
          %173 = sbr.rel (%p171) target = $region24
        $region23: #{tpu_custom_call.1} parent=11 // pred_region
          _
        $region24: #{tpu_custom_call.1} parent=11 // pred_fallthru
          _
        // Predicated region
        $region25: #{tpu_custom_call.1} parent=11 // pred_check
          %p174 = pneg %p124
        $region26: #{tpu_custom_call.1} parent=11 // pred_check_branch
          %176 = sbr.rel (%p174) target = $region28
        $region27: #{tpu_custom_call.1} parent=11 // pred_region
          _
        $region28: #{tpu_custom_call.1} parent=11 // pred_fallthru
          _
      $region12: #{tpu_custom_call.1} parent=5 // pred_fallthru
        _
      %p177 = scmp.lt.s32.totalorder %s14, 2
      // Predicated region
      $region29: #{tpu_custom_call.1} parent=5 // pred_check
        %p178 = pneg %p177
      $region30: #{tpu_custom_call.1} parent=5 // pred_check_branch
        %180 = sbr.rel (%p178) target = $region32
      $region31: #{tpu_custom_call.1} parent=5 // pred_region
        // Predicated region
        $region33: #{tpu_custom_call.1} parent=31 // pred_check
          %p181 = pneg %p34
        $region34: #{tpu_custom_call.1} parent=31 // pred_check_branch
          %183 = sbr.rel (%p181) target = $region36
        $region35: #{tpu_custom_call.1} parent=31 // pred_region
          %p184 = scmp.lt.s32.totalorder %s14, 1
          %s185 = scalar_select %p184, %s14, 1
          %s186 = smul.addr %s185, 8
          %s187 = scalar_lea.vmem %s0, %s186
        $region36: #{tpu_custom_call.1} parent=31 // pred_fallthru
          _
      $region32: #{tpu_custom_call.1} parent=5 // pred_fallthru
        _
      %p188 = scmp.le.s32.totalorder 1, %s14
      %p189 = scmp.lt.s32.totalorder %s14, 3
      %p190 = pnand %p188, %p189
      %p191 = pneg %p190
      // Predicated region
      $region37: #{tpu_custom_call.1} parent=5 // pred_check
        _
      $region38: #{tpu_custom_call.1} parent=5 // pred_check_branch
        %193 = sbr.rel (%p190) target = $region40
      $region39: #{tpu_custom_call.1} parent=5 // pred_region
        %s194 = ssub.s32 %s14, 1
        %p195 = scmp.lt.s32.totalorder %s19, 1
        %s196 = scalar_select %p195, %s19, 1
        %s197 = smul.addr %s196, 8
        %s198 = scalar_lea.vmem %s0, %s197
        %p199 = pneg %p40
        %p200 = pneg %p37
        %p201 = pneg %p61
        %p202 = pneg %p58
        %p203 = pneg %p82
        %p204 = pneg %p79
        %p205 = pneg %p103
        %p206 = pneg %p100
        %p207 = pneg %p124
        %p208 = pneg %p121
        %p209 = pneg %p150
        %p210 = pneg %p147
        %s211 = sand.u32 %s137, 1
        %s212 = scalar_lea.sflag [#allocation3], %s211
        %s213 = sand.u32 %s137, 1
        %s214 = smul.addr %s213, 8
        %s215 = scalar_lea.vmem [#allocation2], %s214
        %p216 = scmp.lt.s32.totalorder %s19, 1
        %s217 = scalar_select %p216, %s19, 1
        %s218 = smul.addr %s217, 8
        %s219 = scalar_lea.vmem %s0, %s218
        %v220 = vld [vmem:[%s219] sm:$0xff]
        %222 = vrot.lane.b32.xlu0 %v220, 64
        %v223 = vpop.permute.xlu0 %222
        %vm225 = vcmask 523264
        %v226 = vmax.f32 %v220, %v223
        %228 = vrot.lane.b32.xlu0 %v226, 124
        %v229 = vpop.permute.xlu0 %228
        %v231 = vmax.f32 %v226, %v229
        %v233 = vrot.slane %v231, 7
        %vm235 = vcmask 1040384
        %v236 = vsel %vm235, 0.0, %v233
        %v237 = vrot.slane %v231, 1
        %vm239 = vcmask 1046528
        %v240 = vsel %vm239, %v237, 0.0
        %v241 = vld [vmem:[%s1] sm:$0xff]
        %v242 = vld [vmem:[%s1 + $0x8] sm:$0xff]
        %v243 = vld [vmem:[%s1 + $0x10] sm:$0xff]
        %v244 = vld [vmem:[%s1 + $0x18] sm:$0xff]
        %v245 = vld [vmem:[%s1 + $0x20] sm:$0xff]
        %v246 = vld [vmem:[%s1 + $0x28] sm:$0xff]
        %v247 = vld [vmem:[%s1 + $0x30] sm:$0xff]
        %v248 = vld [vmem:[%s1 + $0x38] sm:$0xff]
        %v249 = vld [vmem:[%s1 + $0x40] sm:$0xff]
        %v250 = vld [vmem:[%s1 + $0x48] sm:$0xff]
        %v251 = vld [vmem:[%s1 + $0x50] sm:$0xff]
        %v252 = vld [vmem:[%s1 + $0x58] sm:$0xff]
        %v253 = vld [vmem:[%s1 + $0x60] sm:$0xff]
        %v254 = vld [vmem:[%s1 + $0x68] sm:$0xff]
        %v255 = vld [vmem:[%s1 + $0x70] sm:$0xff]
        %v256 = vld [vmem:[%s1 + $0x78] sm:$0xff]
        %s257 = scalar_lea.vmem %s1, 128
        %v258 = vld [vmem:[%s257] sm:$0xff]
        %v259 = vld [vmem:[%s257 + $0x8] sm:$0xff]
        %v260 = vld [vmem:[%s257 + $0x10] sm:$0xff]
        %v261 = vld [vmem:[%s257 + $0x18] sm:$0xff]
        %v262 = vld [vmem:[%s257 + $0x20] sm:$0xff]
        %v263 = vld [vmem:[%s257 + $0x28] sm:$0xff]
        %v264 = vld [vmem:[%s257 + $0x30] sm:$0xff]
        %v265 = vld [vmem:[%s257 + $0x38] sm:$0xff]
        %v266 = vld [vmem:[%s257 + $0x40] sm:$0xff]
        %v267 = vld [vmem:[%s257 + $0x48] sm:$0xff]
        %v268 = vld [vmem:[%s257 + $0x50] sm:$0xff]
        %v269 = vld [vmem:[%s257 + $0x58] sm:$0xff]
        %v270 = vld [vmem:[%s257 + $0x60] sm:$0xff]
        %v271 = vld [vmem:[%s257 + $0x68] sm:$0xff]
        %v272 = vld [vmem:[%s257 + $0x70] sm:$0xff]
        %v273 = vld [vmem:[%s257 + $0x78] sm:$0xff]
        %274 = vmatprep.subr.mxu0 0.0
        %275 = vmatpush1.msra.mxu0 %v258
        %276 = vmatprep.subr.mxu0 0.0
        %277 = vmatpush1.msra.mxu0 %v259
        %278 = vmatprep.subr.mxu0 0.0
        %279 = vmatpush1.msra.mxu0 %v260
        %280 = vmatprep.subr.mxu0 0.0
        %281 = vmatpush1.msra.mxu0 %v261
        %282 = vmatprep.subr.mxu0 0.0
        %283 = vmatpush1.msra.mxu0 %v262
        %284 = vmatprep.subr.mxu0 0.0
        %285 = vmatpush1.msra.mxu0 %v263
        %286 = vmatprep.subr.mxu0 0.0
        %287 = vmatpush1.msra.mxu0 %v264
        %288 = vmatprep.subr.mxu0 0.0
        %289 = vmatpush1.msra.mxu0 %v265
        %290 = vmatprep.subr.mxu0 0.0
        %291 = vmatpush1.msra.mxu0 %v266
        %292 = vmatprep.subr.mxu0 0.0
        %293 = vmatpush1.msra.mxu0 %v267
        %294 = vmatprep.subr.mxu0 0.0
        %295 = vmatpush1.msra.mxu0 %v268
        %296 = vmatprep.subr.mxu0 0.0
        %297 = vmatpush1.msra.mxu0 %v269
        %298 = vmatprep.subr.mxu0 0.0
        %299 = vmatpush1.msra.mxu0 %v270
        %300 = vmatprep.subr.mxu0 0.0
        %301 = vmatpush1.msra.mxu0 %v271
        %302 = vmatprep.subr.mxu0 0.0
        %303 = vmatpush1.msra.mxu0 %v272
        %304 = vmatprep.subr.mxu0 0.0
        %305 = vmatpush1.msra.mxu0 %v273
        %306 = vmatprep.subr.mxu0 0.0
        %307 = vmatpush1.msra.mxu0 0.0
        %308 = vmatprep.subr.mxu0 0.0
        %309 = vmatpush1.msra.mxu0 0.0
        %310 = vmatprep.subr.mxu0 0.0
        %311 = vmatpush1.msra.mxu0 0.0
        %312 = vmatprep.subr.mxu0 0.0
        %313 = vmatpush1.msra.mxu0 0.0
        %314 = vmatprep.subr.mxu0 0.0
        %315 = vmatpush1.msra.mxu0 0.0
        %316 = vmatprep.subr.mxu0 0.0
        %317 = vmatpush1.msra.mxu0 0.0
        %318 = vmatprep.subr.mxu0 0.0
        %319 = vmatpush1.msra.mxu0 0.0
        %320 = vmatprep.subr.mxu0 0.0
        %321 = vmatpush1.msra.mxu0 0.0
        %322 = vmatprep.subr.mxu0 0.0
        %323 = vmatpush1.msra.mxu0 0.0
        %324 = vmatprep.subr.mxu0 0.0
        %325 = vmatpush1.msra.mxu0 0.0
        %326 = vmatprep.subr.mxu0 0.0
        %327 = vmatpush1.msra.mxu0 0.0
        %328 = vmatprep.subr.mxu0 0.0
        %329 = vmatpush1.msra.mxu0 0.0
        %330 = vmatprep.subr.mxu0 0.0
        %331 = vmatpush1.msra.mxu0 0.0
        %332 = vmatprep.subr.mxu0 0.0
        %333 = vmatpush1.msra.mxu0 0.0
        %334 = vmatprep.subr.mxu0 0.0
        %335 = vmatpush1.msra.mxu0 0.0
        %336 = vmatprep.subr.mxu0 0.0
        %337 = vmatpush1.msra.mxu0 0.0
        %338 = vmatprep.mubr.f32.mxu0 0.0
        %339 = vmatmul.mubr.f32.gmra.mrb[0].mxu0 %v231
        %v340 = vpop.f32.mrb[0].mxu0
        %v341 = vadd.f32 0.0, %v340
        %v342 = vpop.f32.mrb[0].mxu0
        %343 = vdwg.mxu0
        %344 = vmatprep.subr.mxu0 0.0
        %345 = vmatpush1.msra.mxu0 %v241
        %346 = vmatprep.subr.mxu0 0.0
        %347 = vmatpush1.msra.mxu0 %v242
        %348 = vmatprep.subr.mxu0 0.0
        %349 = vmatpush1.msra.mxu0 %v243
        %350 = vmatprep.subr.mxu0 0.0
        %351 = vmatpush1.msra.mxu0 %v244
        %352 = vmatprep.subr.mxu0 0.0
        %353 = vmatpush1.msra.mxu0 %v245
        %354 = vmatprep.subr.mxu0 0.0
        %355 = vmatpush1.msra.mxu0 %v246
        %356 = vmatprep.subr.mxu0 0.0
        %357 = vmatpush1.msra.mxu0 %v247
        %358 = vmatprep.subr.mxu0 0.0
        %359 = vmatpush1.msra.mxu0 %v248
        %360 = vmatprep.subr.mxu0 0.0
        %361 = vmatpush1.msra.mxu0 %v249
        %362 = vmatprep.subr.mxu0 0.0
        %363 = vmatpush1.msra.mxu0 %v250
        %364 = vmatprep.subr.mxu0 0.0
        %365 = vmatpush1.msra.mxu0 %v251
        %366 = vmatprep.subr.mxu0 0.0
        %367 = vmatpush1.msra.mxu0 %v252
        %368 = vmatprep.subr.mxu0 0.0
        %369 = vmatpush1.msra.mxu0 %v253
        %370 = vmatprep.subr.mxu0 0.0
        %371 = vmatpush1.msra.mxu0 %v254
        %372 = vmatprep.subr.mxu0 0.0
        %373 = vmatpush1.msra.mxu0 %v255
        %374 = vmatprep.subr.mxu0 0.0
        %375 = vmatpush1.msra.mxu0 %v256
        %376 = vmatprep.subr.mxu0 0.0
        %377 = vmatpush1.msra.mxu0 0.0
        %378 = vmatprep.subr.mxu0 0.0
        %379 = vmatpush1.msra.mxu0 0.0
        %380 = vmatprep.subr.mxu0 0.0
        %381 = vmatpush1.msra.mxu0 0.0
        %382 = vmatprep.subr.mxu0 0.0
        %383 = vmatpush1.msra.mxu0 0.0
        %384 = vmatprep.subr.mxu0 0.0
        %385 = vmatpush1.msra.mxu0 0.0
        %386 = vmatprep.subr.mxu0 0.0
        %387 = vmatpush1.msra.mxu0 0.0
        %388 = vmatprep.subr.mxu0 0.0
        %389 = vmatpush1.msra.mxu0 0.0
        %390 = vmatprep.subr.mxu0 0.0
        %391 = vmatpush1.msra.mxu0 0.0
        %392 = vmatprep.subr.mxu0 0.0
        %393 = vmatpush1.msra.mxu0 0.0
        %394 = vmatprep.subr.mxu0 0.0
        %395 = vmatpush1.msra.mxu0 0.0
        %396 = vmatprep.subr.mxu0 0.0
        %397 = vmatpush1.msra.mxu0 0.0
        %398 = vmatprep.subr.mxu0 0.0
        %399 = vmatpush1.msra.mxu0 0.0
        %400 = vmatprep.subr.mxu0 0.0
        %401 = vmatpush1.msra.mxu0 0.0
        %402 = vmatprep.subr.mxu0 0.0
        %403 = vmatpush1.msra.mxu0 0.0
        %404 = vmatprep.subr.mxu0 0.0
        %405 = vmatpush1.msra.mxu0 0.0
        %406 = vmatprep.subr.mxu0 0.0
        %407 = vmatpush1.msra.mxu0 0.0
        %408 = vmatprep.mubr.f32.mxu0 0.0
        %409 = vmatmul.mubr.f32.gmra.mrb[0].mxu0 %v236
        %v410 = vpop.f32.mrb[0].mxu0
        %v411 = vadd.f32 %v341, %v410
        %v412 = vpop.f32.mrb[0].mxu0
        %413 = vdwg.mxu0
        %s414 = scalar_lea.vmem %s1, 256
        %v415 = vld [vmem:[%s414] sm:$0xff]
        %v416 = vld [vmem:[%s414 + $0x8] sm:$0xff]
        %v417 = vld [vmem:[%s414 + $0x10] sm:$0xff]
        %v418 = vld [vmem:[%s414 + $0x18] sm:$0xff]
        %v419 = vld [vmem:[%s414 + $0x20] sm:$0xff]
        %v420 = vld [vmem:[%s414 + $0x28] sm:$0xff]
        %v421 = vld [vmem:[%s414 + $0x30] sm:$0xff]
        %v422 = vld [vmem:[%s414 + $0x38] sm:$0xff]
        %v423 = vld [vmem:[%s414 + $0x40] sm:$0xff]
        %v424 = vld [vmem:[%s414 + $0x48] sm:$0xff]
        %v425 = vld [vmem:[%s414 + $0x50] sm:$0xff]
        %v426 = vld [vmem:[%s414 + $0x58] sm:$0xff]
        %v427 = vld [vmem:[%s414 + $0x60] sm:$0xff]
        %v428 = vld [vmem:[%s414 + $0x68] sm:$0xff]
        %v429 = vld [vmem:[%s414 + $0x70] sm:$0xff]
        %v430 = vld [vmem:[%s414 + $0x78] sm:$0xff]
        %431 = vmatprep.subr.mxu0 0.0
        %432 = vmatpush1.msra.mxu0 %v415
        %433 = vmatprep.subr.mxu0 0.0
        %434 = vmatpush1.msra.mxu0 %v416
        %435 = vmatprep.subr.mxu0 0.0
        %436 = vmatpush1.msra.mxu0 %v417
        %437 = vmatprep.subr.mxu0 0.0
        %438 = vmatpush1.msra.mxu0 %v418
        %439 = vmatprep.subr.mxu0 0.0
        %440 = vmatpush1.msra.mxu0 %v419
        %441 = vmatprep.subr.mxu0 0.0
        %442 = vmatpush1.msra.mxu0 %v420
        %443 = vmatprep.subr.mxu0 0.0
        %444 = vmatpush1.msra.mxu0 %v421
        %445 = vmatprep.subr.mxu0 0.0
        %446 = vmatpush1.msra.mxu0 %v422
        %447 = vmatprep.subr.mxu0 0.0
        %448 = vmatpush1.msra.mxu0 %v423
        %449 = vmatprep.subr.mxu0 0.0
        %450 = vmatpush1.msra.mxu0 %v424
        %451 = vmatprep.subr.mxu0 0.0
        %452 = vmatpush1.msra.mxu0 %v425
        %453 = vmatprep.subr.mxu0 0.0
        %454 = vmatpush1.msra.mxu0 %v426
        %455 = vmatprep.subr.mxu0 0.0
        %456 = vmatpush1.msra.mxu0 %v427
        %457 = vmatprep.subr.mxu0 0.0
        %458 = vmatpush1.msra.mxu0 %v428
        %459 = vmatprep.subr.mxu0 0.0
        %460 = vmatpush1.msra.mxu0 %v429
        %461 = vmatprep.subr.mxu0 0.0
        %462 = vmatpush1.msra.mxu0 %v430
        %463 = vmatprep.subr.mxu0 0.0
        %464 = vmatpush1.msra.mxu0 0.0
        %465 = vmatprep.subr.mxu0 0.0
        %466 = vmatpush1.msra.mxu0 0.0
        %467 = vmatprep.subr.mxu0 0.0
        %468 = vmatpush1.msra.mxu0 0.0
        %469 = vmatprep.subr.mxu0 0.0
        %470 = vmatpush1.msra.mxu0 0.0
        %471 = vmatprep.subr.mxu0 0.0
        %472 = vmatpush1.msra.mxu0 0.0
        %473 = vmatprep.subr.mxu0 0.0
        %474 = vmatpush1.msra.mxu0 0.0
        %475 = vmatprep.subr.mxu0 0.0
        %476 = vmatpush1.msra.mxu0 0.0
        %477 = vmatprep.subr.mxu0 0.0
        %478 = vmatpush1.msra.mxu0 0.0
        %479 = vmatprep.subr.mxu0 0.0
        %480 = vmatpush1.msra.mxu0 0.0
        %481 = vmatprep.subr.mxu0 0.0
        %482 = vmatpush1.msra.mxu0 0.0
        %483 = vmatprep.subr.mxu0 0.0
        %484 = vmatpush1.msra.mxu0 0.0
        %485 = vmatprep.subr.mxu0 0.0
        %486 = vmatpush1.msra.mxu0 0.0
        %487 = vmatprep.subr.mxu0 0.0
        %488 = vmatpush1.msra.mxu0 0.0
        %489 = vmatprep.subr.mxu0 0.0
        %490 = vmatpush1.msra.mxu0 0.0
        %491 = vmatprep.subr.mxu0 0.0
        %492 = vmatpush1.msra.mxu0 0.0
        %493 = vmatprep.subr.mxu0 0.0
        %494 = vmatpush1.msra.mxu0 0.0
        %495 = vmatprep.mubr.f32.mxu0 0.0
        %496 = vmatmul.mubr.f32.gmra.mrb[0].mxu0 %v240
        %v497 = vpop.f32.mrb[0].mxu0
        %v498 = vadd.f32 0.0, %v497
        %v499 = vpop.f32.mrb[0].mxu0
        %500 = vdwg.mxu0
        %v501 = vadd.f32 %v411, %v498
        %v502 = vld [vmem:[%s2] sm:$0x1]
        %v504 = vlaneseq
        %v505 = vshrl.u32 %v504, 7
        %v506 = vsub.s32 0, %v505
        %v507 = vrot.slane %v502, %v506
        %v509 = vadd.f32 %v501, %v507
        %v510 = vmax.f32 %v509, 0.0
        %v512 = vrot.slane %v510, 7
        %v514 = vsel %vm235, 0.0, %v512
        %v515 = vrot.slane %v510, 1
        %v517 = vsel %vm239, %v515, 0.0
        %v518 = vld [vmem:[%s3] sm:$0xff]
        %v519 = vld [vmem:[%s3 + $0x8] sm:$0xff]
        %v520 = vld [vmem:[%s3 + $0x10] sm:$0xff]
        %v521 = vld [vmem:[%s3 + $0x18] sm:$0xff]
        %v522 = vld [vmem:[%s3 + $0x20] sm:$0xff]
        %v523 = vld [vmem:[%s3 + $0x28] sm:$0xff]
        %v524 = vld [vmem:[%s3 + $0x30] sm:$0xff]
        %v525 = vld [vmem:[%s3 + $0x38] sm:$0xff]
        %s526 = scalar_lea.vmem %s3, 64
        %v527 = vld [vmem:[%s526] sm:$0xff]
        %v528 = vld [vmem:[%s526 + $0x8] sm:$0xff]
        %v529 = vld [vmem:[%s526 + $0x10] sm:$0xff]
        %v530 = vld [vmem:[%s526 + $0x18] sm:$0xff]
        %v531 = vld [vmem:[%s526 + $0x20] sm:$0xff]
        %v532 = vld [vmem:[%s526 + $0x28] sm:$0xff]
        %v533 = vld [vmem:[%s526 + $0x30] sm:$0xff]
        %v534 = vld [vmem:[%s526 + $0x38] sm:$0xff]
        %v535 = vsel %vm225, %v510, 0
        %537 = vmatprep.subr.mxu0 0.0
        %538 = vmatpush1.msra.mxu0 %v527
        %539 = vmatprep.subr.mxu0 0.0
        %540 = vmatpush1.msra.mxu0 %v528
        %541 = vmatprep.subr.mxu0 0.0
        %542 = vmatpush1.msra.mxu0 %v529
        %543 = vmatprep.subr.mxu0 0.0
        %544 = vmatpush1.msra.mxu0 %v530
        %545 = vmatprep.subr.mxu0 0.0
        %546 = vmatpush1.msra.mxu0 %v531
        %547 = vmatprep.subr.mxu0 0.0
        %548 = vmatpush1.msra.mxu0 %v532
        %549 = vmatprep.subr.mxu0 0.0
        %550 = vmatpush1.msra.mxu0 %v533
        %551 = vmatprep.subr.mxu0 0.0
        %552 = vmatpush1.msra.mxu0 %v534
        %553 = vmatprep.subr.mxu0 0.0
        %554 = vmatpush1.msra.mxu0 0.0
        %555 = vmatprep.subr.mxu0 0.0
        %556 = vmatpush1.msra.mxu0 0.0
        %557 = vmatprep.subr.mxu0 0.0
        %558 = vmatpush1.msra.mxu0 0.0
        %559 = vmatprep.subr.mxu0 0.0
        %560 = vmatpush1.msra.mxu0 0.0
        %561 = vmatprep.subr.mxu0 0.0
        %562 = vmatpush1.msra.mxu0 0.0
        %563 = vmatprep.subr.mxu0 0.0
        %564 = vmatpush1.msra.mxu0 0.0
        %565 = vmatprep.subr.mxu0 0.0
        %566 = vmatpush1.msra.mxu0 0.0
        %567 = vmatprep.subr.mxu0 0.0
        %568 = vmatpush1.msra.mxu0 0.0
        %569 = vmatprep.subr.mxu0 0.0
        %570 = vmatpush1.msra.mxu0 0.0
        %571 = vmatprep.subr.mxu0 0.0
        %572 = vmatpush1.msra.mxu0 0.0
        %573 = vmatprep.subr.mxu0 0.0
        %574 = vmatpush1.msra.mxu0 0.0
        %575 = vmatprep.subr.mxu0 0.0
        %576 = vmatpush1.msra.mxu0 0.0
        %577 = vmatprep.subr.mxu0 0.0
        %578 = vmatpush1.msra.mxu0 0.0
        %579 = vmatprep.subr.mxu0 0.0
        %580 = vmatpush1.msra.mxu0 0.0
        %581 = vmatprep.subr.mxu0 0.0
        %582 = vmatpush1.msra.mxu0 0.0
        %583 = vmatprep.subr.mxu0 0.0
        %584 = vmatpush1.msra.mxu0 0.0
        %585 = vmatprep.subr.mxu0 0.0
        %586 = vmatpush1.msra.mxu0 0.0
        %587 = vmatprep.subr.mxu0 0.0
        %588 = vmatpush1.msra.mxu0 0.0
        %589 = vmatprep.subr.mxu0 0.0
        %590 = vmatpush1.msra.mxu0 0.0
        %591 = vmatprep.subr.mxu0 0.0
        %592 = vmatpush1.msra.mxu0 0.0
        %593 = vmatprep.subr.mxu0 0.0
        %594 = vmatpush1.msra.mxu0 0.0
        %595 = vmatprep.subr.mxu0 0.0
        %596 = vmatpush1.msra.mxu0 0.0
        %597 = vmatprep.subr.mxu0 0.0
        %598 = vmatpush1.msra.mxu0 0.0
        %599 = vmatprep.subr.mxu0 0.0
        %600 = vmatpush1.msra.mxu0 0.0
        %601 = vmatprep.mubr.f32.mxu0 0.0
        %602 = vmatmul.mubr.f32.gmra.mrb[0].mxu0 %v535
        %v603 = vpop.f32.mrb[0].mxu0
        %v604 = vadd.f32 0.0, %v603
        %v605 = vpop.f32.mrb[0].mxu0
        %606 = vdwg.mxu0
        %v608 = vsel %vm225, %v514, 0
        %610 = vmatprep.subr.mxu0 0.0
        %611 = vmatpush1.msra.mxu0 %v518
        %612 = vmatprep.subr.mxu0 0.0
        %613 = vmatpush1.msra.mxu0 %v519
        %614 = vmatprep.subr.mxu0 0.0
        %615 = vmatpush1.msra.mxu0 %v520
        %616 = vmatprep.subr.mxu0 0.0
        %617 = vmatpush1.msra.mxu0 %v521
        %618 = vmatprep.subr.mxu0 0.0
        %619 = vmatpush1.msra.mxu0 %v522
        %620 = vmatprep.subr.mxu0 0.0
        %621 = vmatpush1.msra.mxu0 %v523
        %622 = vmatprep.subr.mxu0 0.0
        %623 = vmatpush1.msra.mxu0 %v524
        %624 = vmatprep.subr.mxu0 0.0
        %625 = vmatpush1.msra.mxu0 %v525
        %626 = vmatprep.subr.mxu0 0.0
        %627 = vmatpush1.msra.mxu0 0.0
        %628 = vmatprep.subr.mxu0 0.0
        %629 = vmatpush1.msra.mxu0 0.0
        %630 = vmatprep.subr.mxu0 0.0
        %631 = vmatpush1.msra.mxu0 0.0
        %632 = vmatprep.subr.mxu0 0.0
        %633 = vmatpush1.msra.mxu0 0.0
        %634 = vmatprep.subr.mxu0 0.0
        %635 = vmatpush1.msra.mxu0 0.0
        %636 = vmatprep.subr.mxu0 0.0
        %637 = vmatpush1.msra.mxu0 0.0
        %638 = vmatprep.subr.mxu0 0.0
        %639 = vmatpush1.msra.mxu0 0.0
        %640 = vmatprep.subr.mxu0 0.0
        %641 = vmatpush1.msra.mxu0 0.0
        %642 = vmatprep.subr.mxu0 0.0
        %643 = vmatpush1.msra.mxu0 0.0
        %644 = vmatprep.subr.mxu0 0.0
        %645 = vmatpush1.msra.mxu0 0.0
        %646 = vmatprep.subr.mxu0 0.0
        %647 = vmatpush1.msra.mxu0 0.0
        %648 = vmatprep.subr.mxu0 0.0
        %649 = vmatpush1.msra.mxu0 0.0
        %650 = vmatprep.subr.mxu0 0.0
        %651 = vmatpush1.msra.mxu0 0.0
        %652 = vmatprep.subr.mxu0 0.0
        %653 = vmatpush1.msra.mxu0 0.0
        %654 = vmatprep.subr.mxu0 0.0
        %655 = vmatpush1.msra.mxu0 0.0
        %656 = vmatprep.subr.mxu0 0.0
        %657 = vmatpush1.msra.mxu0 0.0
        %658 = vmatprep.subr.mxu0 0.0
        %659 = vmatpush1.msra.mxu0 0.0
        %660 = vmatprep.subr.mxu0 0.0
        %661 = vmatpush1.msra.mxu0 0.0
        %662 = vmatprep.subr.mxu0 0.0
        %663 = vmatpush1.msra.mxu0 0.0
        %664 = vmatprep.subr.mxu0 0.0
        %665 = vmatpush1.msra.mxu0 0.0
        %666 = vmatprep.subr.mxu0 0.0
        %667 = vmatpush1.msra.mxu0 0.0
        %668 = vmatprep.subr.mxu0 0.0
        %669 = vmatpush1.msra.mxu0 0.0
        %670 = vmatprep.subr.mxu0 0.0
        %671 = vmatpush1.msra.mxu0 0.0
        %672 = vmatprep.subr.mxu0 0.0
        %673 = vmatpush1.msra.mxu0 0.0
        %674 = vmatprep.mubr.f32.mxu0 0.0
        %675 = vmatmul.mubr.f32.gmra.mrb[0].mxu0 %v608
        %v676 = vpop.f32.mrb[0].mxu0
        %v677 = vadd.f32 %v604, %v676
        %v678 = vpop.f32.mrb[0].mxu0
        %679 = vdwg.mxu0
        %s680 = scalar_lea.vmem %s3, 128
        %v681 = vld [vmem:[%s680] sm:$0xff]
        %v682 = vld [vmem:[%s680 + $0x8] sm:$0xff]
        %v683 = vld [vmem:[%s680 + $0x10] sm:$0xff]
        %v684 = vld [vmem:[%s680 + $0x18] sm:$0xff]
        %v685 = vld [vmem:[%s680 + $0x20] sm:$0xff]
        %v686 = vld [vmem:[%s680 + $0x28] sm:$0xff]
        %v687 = vld [vmem:[%s680 + $0x30] sm:$0xff]
        %v688 = vld [vmem:[%s680 + $0x38] sm:$0xff]
        %v690 = vsel %vm225, %v517, 0
        %692 = vmatprep.subr.mxu0 0.0
        %693 = vmatpush1.msra.mxu0 %v681
        %694 = vmatprep.subr.mxu0 0.0
        %695 = vmatpush1.msra.mxu0 %v682
        %696 = vmatprep.subr.mxu0 0.0
        %697 = vmatpush1.msra.mxu0 %v683
        %698 = vmatprep.subr.mxu0 0.0
        %699 = vmatpush1.msra.mxu0 %v684
        %700 = vmatprep.subr.mxu0 0.0
        %701 = vmatpush1.msra.mxu0 %v685
        %702 = vmatprep.subr.mxu0 0.0
        %703 = vmatpush1.msra.mxu0 %v686
        %704 = vmatprep.subr.mxu0 0.0
        %705 = vmatpush1.msra.mxu0 %v687
        %706 = vmatprep.subr.mxu0 0.0
        %707 = vmatpush1.msra.mxu0 %v688
        %708 = vmatprep.subr.mxu0 0.0
        %709 = vmatpush1.msra.mxu0 0.0
        %710 = vmatprep.subr.mxu0 0.0
        %711 = vmatpush1.msra.mxu0 0.0
        %712 = vmatprep.subr.mxu0 0.0
        %713 = vmatpush1.msra.mxu0 0.0
        %714 = vmatprep.subr.mxu0 0.0
        %715 = vmatpush1.msra.mxu0 0.0
        %716 = vmatprep.subr.mxu0 0.0
        %717 = vmatpush1.msra.mxu0 0.0
        %718 = vmatprep.subr.mxu0 0.0
        %719 = vmatpush1.msra.mxu0 0.0
        %720 = vmatprep.subr.mxu0 0.0
        %721 = vmatpush1.msra.mxu0 0.0
        %722 = vmatprep.subr.mxu0 0.0
        %723 = vmatpush1.msra.mxu0 0.0
        %724 = vmatprep.subr.mxu0 0.0
        %725 = vmatpush1.msra.mxu0 0.0
        %726 = vmatprep.subr.mxu0 0.0
        %727 = vmatpush1.msra.mxu0 0.0
        %728 = vmatprep.subr.mxu0 0.0
        %729 = vmatpush1.msra.mxu0 0.0
        %730 = vmatprep.subr.mxu0 0.0
        %731 = vmatpush1.msra.mxu0 0.0
        %732 = vmatprep.subr.mxu0 0.0
        %733 = vmatpush1.msra.mxu0 0.0
        %734 = vmatprep.subr.mxu0 0.0
        %735 = vmatpush1.msra.mxu0 0.0
        %736 = vmatprep.subr.mxu0 0.0
        %737 = vmatpush1.msra.mxu0 0.0
        %738 = vmatprep.subr.mxu0 0.0
        %739 = vmatpush1.msra.mxu0 0.0
        %740 = vmatprep.subr.mxu0 0.0
        %741 = vmatpush1.msra.mxu0 0.0
        %742 = vmatprep.subr.mxu0 0.0
        %743 = vmatpush1.msra.mxu0 0.0
        %744 = vmatprep.subr.mxu0 0.0
        %745 = vmatpush1.msra.mxu0 0.0
        %746 = vmatprep.subr.mxu0 0.0
        %747 = vmatpush1.msra.mxu0 0.0
        %748 = vmatprep.subr.mxu0 0.0
        %749 = vmatpush1.msra.mxu0 0.0
        %750 = vmatprep.subr.mxu0 0.0
        %751 = vmatpush1.msra.mxu0 0.0
        %752 = vmatprep.subr.mxu0 0.0
        %753 = vmatpush1.msra.mxu0 0.0
        %754 = vmatprep.subr.mxu0 0.0
        %755 = vmatpush1.msra.mxu0 0.0
        %756 = vmatprep.mubr.f32.mxu0 0.0
        %757 = vmatmul.mubr.f32.gmra.mrb[0].mxu0 %v690
        %v758 = vpop.f32.mrb[0].mxu0
        %v759 = vadd.f32 0.0, %v758
        %v760 = vpop.f32.mrb[0].mxu0
        %761 = vdwg.mxu0
        %v762 = vadd.f32 %v677, %v759
        %v763 = vld [vmem:[%s4] sm:$0x1]
        %v765 = vlaneseq
        %v766 = vshrl.u32 %v765, 7
        %v767 = vsub.s32 0, %v766
        %v768 = vrot.slane %v763, %v767
        %v770 = vadd.f32 %v762, %v768
        %v771 = vmax.f32 %v770, 0.0
        %772 = vst [vmem:[%s215] sm:$0xff] %v771
        %s773 = sand.u32 %s137, 1
        %s774 = scalar_lea.sflag [#allocation3], %s773
        %s775 = sand.u32 %s137, 1
        %s776 = smul.addr %s775, 8
        %s777 = scalar_lea.vmem [#allocation2], %s776
        // Predicated region
        $region41: #{tpu_custom_call.1} parent=39 // pred_check
          %p778 = pneg %p147
        $region42: #{tpu_custom_call.1} parent=39 // pred_check_branch
          %780 = sbr.rel (%p778) target = $region44
        $region43: #{tpu_custom_call.1} parent=39 // pred_region
          %s782 = ssub.s32 128, 128
          %783 = vsyncadd %s774, %s782
          %s784 = smul.addr %s19, 128
          %s785 = scalar_lea.hbm %s5, %s784
          %s787 = sshll.u32 %s777, 4
          %s788 = int_to_ptr.vmem [resolvable:$true] %s787
          %790 = dma.vmem_to_hbm [thread:$0]  %s788, 128, %s785, %s774
        $region44: #{tpu_custom_call.1} parent=39 // pred_fallthru
          _
      $region40: #{tpu_custom_call.1} parent=5 // pred_fallthru
        _
      %p791 = scmp.le.s32.totalorder 2, %s14
      // Predicated region
      $region45: #{tpu_custom_call.1} parent=5 // pred_check
        %p792 = pneg %p791
      $region46: #{tpu_custom_call.1} parent=5 // pred_check_branch
        %794 = sbr.rel (%p792) target = $region48
      $region47: #{tpu_custom_call.1} parent=5 // pred_region
        %s795 = ssub.s32 %s14, 2
        // Predicated region
        $region49: #{tpu_custom_call.1} parent=47 // pred_check
          %p796 = pneg %p153
        $region50: #{tpu_custom_call.1} parent=47 // pred_check_branch
          %798 = sbr.rel (%p796) target = $region52
        $region51: #{tpu_custom_call.1} parent=47 // pred_region
          %s799 = sand.u32 %s138, 1
          %s800 = scalar_lea.sflag [#allocation3], %s799
          %s801 = sand.u32 %s138, 1
          %s802 = smul.addr %s801, 8
          %s803 = scalar_lea.vmem [#allocation2], %s802
          %804 = dma.done %s800, 128
        $region52: #{tpu_custom_call.1} parent=47 // pred_fallthru
          _
      $region48: #{tpu_custom_call.1} parent=5 // pred_fallthru
        _
    $region6: #{tpu_custom_call.1} parent=1 // loop_footer
      %s18 = sadd.s32 1, %s14
    $region7: #{tpu_custom_call.1} parent=1 // loop_footer_branch
      %13 = sbr.rel target = $region3
    $region8: #{tpu_custom_call.1} parent=1 // loop_exit
      _
    %805 = vsyncpa [#allocation3], 1
    %s806 = scalar_lea.sflag [#allocation3], 1
    %807 = vsyncpa %s806, 1

</llo_original>
